<compile_context>
chip_gen: v7x
topology: tpu7x:2x2x1
jax: 0.10.0
libtpu: 0.0.40
codegen_flags: <defaults>
</compile_context>

<pallas_src>
import functools

import jax
import jax.numpy as jnp
from jax import lax
from jax.experimental import pallas as pl
from jax.experimental.pallas import tpu as pltpu

LANE = 128
TILE_ROWS = 8192          # 8192 x 128 x 4 B = 4 MiB per f32 input block
VMEM_LIMIT_BYTES = 32 * 1024 * 1024   # covers 2 inputs x 2 buffers x 4 MiB


def _num_tensorcores():
    """2 on 2-TC chips (v7x); 1 on single-TC chips (v5e/v6e) or if unknown."""
    try:
        kind = jax.devices()[0].device_kind.lower()
    except Exception:
        return 1
    return 2 if "v7" in kind else 1


def _dice_bce_kernel(x_ref, y_ref, out_ref, acc_xy, acc_xpy, acc_bce, *,
                     num_tiles, tiles_per_split, valid_rows_last, tile_rows,
                     need_clamp, binary_targets):
    c = pl.program_id(0)            # split ("parallel") index
    i = pl.program_id(1)            # tile index within this split
    t = c * tiles_per_split + i     # global tile index (may exceed num_tiles-1)

    @pl.when(i == 0)
    def _init():
        acc_xy[...] = jnp.zeros_like(acc_xy)
        acc_xpy[...] = jnp.zeros_like(acc_xpy)
        acc_bce[...] = jnp.zeros_like(acc_bce)

    def _accumulate(valid_rows):
        # Cast to f32 first, then reshape (f32 reshape matches vreg tiling).
        xr = x_ref[...].astype(jnp.float32).reshape(-1, 8, LANE)
        yr = y_ref[...].astype(jnp.float32).reshape(-1, 8, LANE)
        rmask = None
        if valid_rows is not None:                      # static decision
            g = lax.broadcasted_iota(jnp.int32, xr.shape, 0)
            s = lax.broadcasted_iota(jnp.int32, xr.shape, 1)
            rmask = (g * 8 + s) < valid_rows
            xr = jnp.where(rmask, xr, 0.0)              # x=y=0 contributes 0
            yr = jnp.where(rmask, yr, 0.0)
        acc_xy[...] += jnp.sum(xr * yr, axis=0)
        acc_xpy[...] += jnp.sum(xr + yr, axis=0)
        if binary_targets:
            # single log per element; only valid when y is exactly 0/1.
            bce = jnp.maximum(jnp.log(jnp.where(yr > 0.5, xr, 1.0 - xr)),
                              -100.0)
        else:
            # Clamp BEFORE the multiply by yr (see invariant note above).
            log_x = jnp.maximum(jnp.log(xr), -100.0)
            log_1mx = jnp.maximum(jnp.log(1.0 - xr), -100.0)
            bce = log_1mx + yr * (log_x - log_1mx)
        if rmask is not None:
            bce = jnp.where(rmask, bce, 0.0)
        acc_bce[...] += jnp.sum(bce, axis=0)

    last = num_tiles - 1
    partial_last = valid_rows_last < tile_rows          # static

    if partial_last:
        @pl.when(t < last)                               # steady state, no mask
        def _interior():
            _accumulate(None)

        @pl.when(t == last)                              # masked last tile
        def _last_tile():
            _accumulate(valid_rows_last)
    elif need_clamp:
        @pl.when(t <= last)                              # skip clamped duplicate
        def _interior():
            _accumulate(None)
    else:
        _accumulate(None)

    # Epilogue: just store the three vreg-sized accumulators for this split.
    @pl.when(i == tiles_per_split - 1)
    def _finalize():
        out_ref[0, 0] = acc_xy[...]
        out_ref[0, 1] = acc_xpy[...]
        out_ref[0, 2] = acc_bce[...]


def _tail_terms(x, y, binary_targets):
    """Plain-JAX terms for the <=1023-element tail (or tiny inputs)."""
    x = x.astype(jnp.float32)
    y = y.astype(jnp.float32)
    if binary_targets:
        bce = jnp.maximum(jnp.log(jnp.where(y > 0.5, x, 1.0 - x)), -100.0)
    else:
        log_x = jnp.maximum(jnp.log(x), -100.0)
        log_1mx = jnp.maximum(jnp.log(1.0 - x), -100.0)
        bce = log_1mx + y * (log_x - log_1mx)
    return jnp.sum(x * y), jnp.sum(x + y), jnp.sum(bce)


def dice_bce_loss(inputs, targets, dice_weight, smooth=1e-05, *,
                  binary_targets=False, tile_rows=None, num_splits=None):
    """Pallas TPU implementation of DiceBCELoss.forward.

    binary_targets: opt-in fast path (single log/elem); valid only for 0/1
        targets.  tile_rows / num_splits are test/tuning overrides.
    """
    x = jnp.ravel(inputs)            # native dtype; kernel casts to f32
    y = jnp.ravel(targets)
    n = x.shape[0]

    granule = 8 * LANE               # 1024: keeps kernel rows a multiple of 8
    rows = (n // granule) * 8
    n_main = rows * LANE

    sum_xy = jnp.float32(0.0)
    sum_xpy = jnp.float32(0.0)
    bce_acc = jnp.float32(0.0)       # un-negated sum of per-element BCE terms

    if rows > 0:
        # Static prefix slice (identity when n is already 1024-aligned) — no
        # padded copy of the tensor.
        x2 = (x if n_main == n else x[:n_main]).reshape(rows, LANE)
        y2 = (y if n_main == n else y[:n_main]).reshape(rows, LANE)

        tr = TILE_ROWS if tile_rows is None else tile_rows
        tr = min(tr, rows)
        tr = max((tr // 8) * 8, 8)                      # multiple of 8, >= 8
        num_tiles = pl.cdiv(rows, tr)

        ns = _num_tensorcores() if num_splits is None else num_splits
        ns = max(1, min(ns, num_tiles))
        tiles_per_split = pl.cdiv(num_tiles, ns)
        need_clamp = ns * tiles_per_split != num_tiles
        valid_rows_last = rows - (num_tiles - 1) * tr

        def in_map(c, i):
            t = c * tiles_per_split + i
            if need_clamp:
                # Clamped duplicate lands right after the same block in the
                # last split -> block index unchanged -> no extra DMA; the
                # kernel skips its compute.
                t = jnp.minimum(t, num_tiles - 1)
            return (t, 0)

        kernel = functools.partial(
            _dice_bce_kernel,
            num_tiles=num_tiles,
            tiles_per_split=tiles_per_split,
            valid_rows_last=valid_rows_last,
            tile_rows=tr,
            need_clamp=need_clamp,
            binary_targets=binary_targets,
        )

        itemsize = jnp.dtype(x.dtype).itemsize
        cost = pl.CostEstimate(
            flops=10 * n_main,
            transcendentals=(1 if binary_targets else 2) * n_main,
            bytes_accessed=2 * n_main * itemsize + ns * 3 * 8 * LANE * 4,
        )

        partials = pl.pallas_call(
            kernel,
            out_shape=jax.ShapeDtypeStruct((ns, 3, 8, LANE), jnp.float32),
            grid_spec=pltpu.PrefetchScalarGridSpec(
                num_scalar_prefetch=0,
                grid=(ns, tiles_per_split),
                in_specs=[
                    pl.BlockSpec((tr, LANE), in_map),
                    pl.BlockSpec((tr, LANE), in_map),
                ],
                out_specs=pl.BlockSpec((1, 3, 8, LANE),
                                       lambda c, i: (c, 0, 0, 0)),
                scratch_shapes=[
                    pltpu.VMEM((8, LANE), jnp.float32),
                    pltpu.VMEM((8, LANE), jnp.float32),
                    pltpu.VMEM((8, LANE), jnp.float32),
                ],
            ),
            compiler_params=pltpu.CompilerParams(
                dimension_semantics=("parallel", "arbitrary"),
                vmem_limit_bytes=VMEM_LIMIT_BYTES,
            ),
            cost_estimate=cost,
        )(x2, y2)

        sums = jnp.sum(partials, axis=(0, 2, 3))        # tiny (3,8,128*ns) reduce
        sum_xy = sums[0]
        sum_xpy = sums[1]
        bce_acc = sums[2]

    if n_main < n:                                       # <=1023-element tail
        txy, txpy, tbce = _tail_terms(x[n_main:], y[n_main:], binary_targets)
        sum_xy = sum_xy + txy
        sum_xpy = sum_xpy + txpy
        bce_acc = bce_acc + tbce

    bce_mean = -bce_acc / jnp.float32(n)
    dice_loss = 1.0 - (2.0 * sum_xy + smooth) / (sum_xpy + smooth)
    return bce_mean + jnp.asarray(dice_weight, jnp.float32) * dice_loss


def _reference(inputs, targets, dice_weight, smooth=1e-05):
    x = jnp.ravel(inputs).astype(jnp.float32)
    y = jnp.ravel(targets).astype(jnp.float32)
    inter = jnp.sum(x * y)
    dice = 1.0 - (2.0 * inter + smooth) / (jnp.sum(x) + jnp.sum(y) + smooth)
    bce = jnp.mean(-(y * jnp.maximum(jnp.log(x), -100.0)
                     + (1.0 - y) * jnp.maximum(jnp.log(1.0 - x), -100.0)))
    return bce + dice_weight * dice


if __name__ == "__main__":
    key = jax.random.PRNGKey(0)
    dice_weight = 0.5
    k1, k2, k3, k4, k5, k6 = jax.random.split(key, 6)

    # Test 1: small NCHW segmentation-style shape (single tile, aligned n).
    B, C, H, W = 2, 4, 16, 16
    inputs = jax.nn.sigmoid(jax.random.normal(k1, (B, C, H, W), dtype=jnp.float32))
    targets = (jax.random.uniform(k2, (B, C, H, W)) > 0.5).astype(jnp.float32)
    loss = jax.block_until_ready(dice_bce_loss(inputs, targets, dice_weight))
    ref = _reference(inputs, targets, dice_weight)
    assert jnp.allclose(loss, ref, rtol=1e-5, atol=1e-5), (loss, ref)

    # Test 2: multi-tile + 2-way split + clamped duplicate + masked last tile
    # (small tile_rows / forced splits just to exercise the code paths).
    inputs2 = jax.nn.sigmoid(jax.random.normal(k3, (4, 8, 96, 96), dtype=jnp.float32))
    targets2 = (jax.random.uniform(k4, (4, 8, 96, 96)) > 0.5).astype(jnp.float32)
    loss2 = jax.block_until_ready(
        dice_bce_loss(inputs2, targets2, 0.25, tile_rows=512, num_splits=2))
    ref2 = _reference(inputs2, targets2, 0.25)
    assert jnp.allclose(loss2, ref2, rtol=1e-5, atol=1e-5), (loss2, ref2)

    # Test 3: size not a multiple of 1024 (exercises the plain-JAX tail path).
    inputs3 = jax.nn.sigmoid(jax.random.normal(k5, (2, 3, 17, 19), dtype=jnp.float32))
    targets3 = (jax.random.uniform(k6, (2, 3, 17, 19)) > 0.5).astype(jnp.float32)
    loss3 = jax.block_until_ready(dice_bce_loss(inputs3, targets3, dice_weight))
    ref3 = _reference(inputs3, targets3, dice_weight)
    assert jnp.allclose(loss3, ref3, rtol=1e-5, atol=1e-5), (loss3, ref3)

    # Test 4: opt-in binary-target fast path (targets are exactly 0/1 here).
    loss4 = jax.block_until_ready(
        dice_bce_loss(inputs, targets, dice_weight, binary_targets=True))
    assert jnp.allclose(loss4, ref, rtol=1e-5, atol=1e-5), (loss4, ref)

    print("KERNEL_OK")
</pallas_src>

<mosaic_0001>
module attributes {stable_mosaic.version = 11 : i64} {
  func.func @_dice_bce_kernel(%arg0: i32, %arg1: i32, %arg2: memref<16x128xf32, #tpu.memory_space<vmem>>, %arg3: memref<16x128xf32, #tpu.memory_space<vmem>>, %arg4: memref<1x3x8x128xf32, #tpu.memory_space<vmem>>, %arg5: memref<8x128xf32, #tpu.memory_space<vmem>>, %arg6: memref<8x128xf32, #tpu.memory_space<vmem>>, %arg7: memref<8x128xf32, #tpu.memory_space<vmem>>) attributes {dimension_semantics = [#tpu.dimension_semantics<parallel>, #tpu.dimension_semantics<arbitrary>], iteration_bounds = array<i64: 1, 1>, scalar_prefetch = 0 : i64, scratch_operands = 3 : i64, tpu.core_type = #tpu.core_type<tc>, window_params = [{transform_indices = @transform_0, window_bounds = array<i64: 16, 128>}, {transform_indices = @transform_1, window_bounds = array<i64: 16, 128>}, {transform_indices = @transform_2, window_bounds = array<i64: 1, 3, 8, 128>}]} {
    %c0_i32 = arith.constant 0 : i32
    %0 = arith.cmpi eq, %arg1, %c0_i32 : i32
    %1 = arith.extui %0 : i1 to i32
    %c0_i32_0 = arith.constant 0 : i32
    %2 = arith.cmpi ne, %1, %c0_i32_0 : i32
    scf.if %2 {
      %cst_23 = arith.constant 0.000000e+00 : f32
      %35 = vector.broadcast %cst_23 : f32 to vector<8x128xf32>
      %c0_24 = arith.constant 0 : index
      %c0_25 = arith.constant 0 : index
      %36 = vector.load %arg5[%c0_24, %c0_25] : memref<8x128xf32, #tpu.memory_space<vmem>>, vector<8x128xf32>
      tpu.vector_store %arg5[%c0_24, %c0_25], %35 {strides = array<i32>} : memref<8x128xf32, #tpu.memory_space<vmem>>, vector<8x128xf32>,
      %cst_26 = arith.constant 0.000000e+00 : f32
      %37 = vector.broadcast %cst_26 : f32 to vector<8x128xf32>
      %c0_27 = arith.constant 0 : index
      %c0_28 = arith.constant 0 : index
      %38 = vector.load %arg6[%c0_27, %c0_28] : memref<8x128xf32, #tpu.memory_space<vmem>>, vector<8x128xf32>
      tpu.vector_store %arg6[%c0_27, %c0_28], %37 {strides = array<i32>} : memref<8x128xf32, #tpu.memory_space<vmem>>, vector<8x128xf32>,
      %cst_29 = arith.constant 0.000000e+00 : f32
      %39 = vector.broadcast %cst_29 : f32 to vector<8x128xf32>
      %c0_30 = arith.constant 0 : index
      %c0_31 = arith.constant 0 : index
      %40 = vector.load %arg7[%c0_30, %c0_31] : memref<8x128xf32, #tpu.memory_space<vmem>>, vector<8x128xf32>
      tpu.vector_store %arg7[%c0_30, %c0_31], %39 {strides = array<i32>} : memref<8x128xf32, #tpu.memory_space<vmem>>, vector<8x128xf32>,
    } else {
    }
    %c0 = arith.constant 0 : index
    %c0_1 = arith.constant 0 : index
    %3 = vector.load %arg2[%c0, %c0_1] : memref<16x128xf32, #tpu.memory_space<vmem>>, vector<16x128xf32>
    %4 = vector.shape_cast %3 : vector<16x128xf32> to vector<2x8x128xf32>
    %c0_2 = arith.constant 0 : index
    %c0_3 = arith.constant 0 : index
    %5 = vector.load %arg3[%c0_2, %c0_3] : memref<16x128xf32, #tpu.memory_space<vmem>>, vector<16x128xf32>
    %6 = vector.shape_cast %5 : vector<16x128xf32> to vector<2x8x128xf32>
    %c0_4 = arith.constant 0 : index
    %c0_5 = arith.constant 0 : index
    %7 = vector.load %arg5[%c0_4, %c0_5] : memref<8x128xf32, #tpu.memory_space<vmem>>, vector<8x128xf32>
    %8 = arith.mulf %4, %6 : vector<2x8x128xf32>
    %cst = arith.constant dense<0.000000e+00> : vector<8x128xf32>
    %9 = vector.multi_reduction <add>, %8, %cst [0] : vector<2x8x128xf32> to vector<8x128xf32>
    %10 = arith.addf %7, %9 : vector<8x128xf32>
    %c0_6 = arith.constant 0 : index
    %c0_7 = arith.constant 0 : index
    %11 = vector.load %arg5[%c0_6, %c0_7] : memref<8x128xf32, #tpu.memory_space<vmem>>, vector<8x128xf32>
    tpu.vector_store %arg5[%c0_6, %c0_7], %10 {strides = array<i32>} : memref<8x128xf32, #tpu.memory_space<vmem>>, vector<8x128xf32>,
    %c0_8 = arith.constant 0 : index
    %c0_9 = arith.constant 0 : index
    %12 = vector.load %arg6[%c0_8, %c0_9] : memref<8x128xf32, #tpu.memory_space<vmem>>, vector<8x128xf32>
    %13 = arith.addf %4, %6 : vector<2x8x128xf32>
    %cst_10 = arith.constant dense<0.000000e+00> : vector<8x128xf32>
    %14 = vector.multi_reduction <add>, %13, %cst_10 [0] : vector<2x8x128xf32> to vector<8x128xf32>
    %15 = arith.addf %12, %14 : vector<8x128xf32>
    %c0_11 = arith.constant 0 : index
    %c0_12 = arith.constant 0 : index
    %16 = vector.load %arg6[%c0_11, %c0_12] : memref<8x128xf32, #tpu.memory_space<vmem>>, vector<8x128xf32>
    tpu.vector_store %arg6[%c0_11, %c0_12], %15 {strides = array<i32>} : memref<8x128xf32, #tpu.memory_space<vmem>>, vector<8x128xf32>,
    %17 = math.log %4 : vector<2x8x128xf32>
    %cst_13 = arith.constant -1.000000e+02 : f32
    %18 = vector.broadcast %cst_13 : f32 to vector<2x8x128xf32>
    %19 = arith.maximumf %17, %18 : vector<2x8x128xf32>
    %cst_14 = arith.constant 1.000000e+00 : f32
    %20 = vector.broadcast %cst_14 : f32 to vector<2x8x128xf32>
    %21 = arith.subf %20, %4 : vector<2x8x128xf32>
    %22 = math.log %21 : vector<2x8x128xf32>
    %cst_15 = arith.constant -1.000000e+02 : f32
    %23 = vector.broadcast %cst_15 : f32 to vector<2x8x128xf32>
    %24 = arith.maximumf %22, %23 : vector<2x8x128xf32>
    %25 = arith.subf %19, %24 : vector<2x8x128xf32>
    %26 = arith.mulf %6, %25 : vector<2x8x128xf32>
    %27 = arith.addf %24, %26 : vector<2x8x128xf32>
    %c0_16 = arith.constant 0 : index
    %c0_17 = arith.constant 0 : index
    %28 = vector.load %arg7[%c0_16, %c0_17] : memref<8x128xf32, #tpu.memory_space<vmem>>, vector<8x128xf32>
    %cst_18 = arith.constant dense<0.000000e+00> : vector<8x128xf32>
    %29 = vector.multi_reduction <add>, %27, %cst_18 [0] : vector<2x8x128xf32> to vector<8x128xf32>
    %30 = arith.addf %28, %29 : vector<8x128xf32>
    %c0_19 = arith.constant 0 : index
    %c0_20 = arith.constant 0 : index
    %31 = vector.load %arg7[%c0_19, %c0_20] : memref<8x128xf32, #tpu.memory_space<vmem>>, vector<8x128xf32>
    tpu.vector_store %arg7[%c0_19, %c0_20], %30 {strides = array<i32>} : memref<8x128xf32, #tpu.memory_space<vmem>>, vector<8x128xf32>,
    %c0_i32_21 = arith.constant 0 : i32
    %32 = arith.cmpi eq, %arg1, %c0_i32_21 : i32
    %33 = arith.extui %32 : i1 to i32
    %c0_i32_22 = arith.constant 0 : i32
    %34 = arith.cmpi ne, %33, %c0_i32_22 : i32
    scf.if %34 {
      %c0_23 = arith.constant 0 : index
      %c0_24 = arith.constant 0 : index
      %35 = vector.load %arg5[%c0_23, %c0_24] : memref<8x128xf32, #tpu.memory_space<vmem>>, vector<8x128xf32>
      %c0_25 = arith.constant 0 : index
      %c0_26 = arith.constant 0 : index
      %c0_27 = arith.constant 0 : index
      %c0_28 = arith.constant 0 : index
      %36 = vector.load %arg4[%c0_25, %c0_26, %c0_27, %c0_28] : memref<1x3x8x128xf32, #tpu.memory_space<vmem>>, vector<1x1x8x128xf32>
      %37 = vector.shape_cast %36 : vector<1x1x8x128xf32> to vector<8x128xf32>
      %38 = vector.shape_cast %35 : vector<8x128xf32> to vector<1x1x8x128xf32>
      tpu.vector_store %arg4[%c0_25, %c0_26, %c0_27, %c0_28], %38 {strides = array<i32>} : memref<1x3x8x128xf32, #tpu.memory_space<vmem>>, vector<1x1x8x128xf32>,
      %c0_29 = arith.constant 0 : index
      %c0_30 = arith.constant 0 : index
      %39 = vector.load %arg6[%c0_29, %c0_30] : memref<8x128xf32, #tpu.memory_space<vmem>>, vector<8x128xf32>
      %c0_31 = arith.constant 0 : index
      %c1 = arith.constant 1 : index
      %c0_32 = arith.constant 0 : index
      %c0_33 = arith.constant 0 : index
      %40 = vector.load %arg4[%c0_31, %c1, %c0_32, %c0_33] : memref<1x3x8x128xf32, #tpu.memory_space<vmem>>, vector<1x1x8x128xf32>
      %41 = vector.shape_cast %40 : vector<1x1x8x128xf32> to vector<8x128xf32>
      %42 = vector.shape_cast %39 : vector<8x128xf32> to vector<1x1x8x128xf32>
      tpu.vector_store %arg4[%c0_31, %c1, %c0_32, %c0_33], %42 {strides = array<i32>} : memref<1x3x8x128xf32, #tpu.memory_space<vmem>>, vector<1x1x8x128xf32>,
      %c0_34 = arith.constant 0 : index
      %c0_35 = arith.constant 0 : index
      %43 = vector.load %arg7[%c0_34, %c0_35] : memref<8x128xf32, #tpu.memory_space<vmem>>, vector<8x128xf32>
      %c0_36 = arith.constant 0 : index
      %c2 = arith.constant 2 : index
      %c0_37 = arith.constant 0 : index
      %c0_38 = arith.constant 0 : index
      %44 = vector.load %arg4[%c0_36, %c2, %c0_37, %c0_38] : memref<1x3x8x128xf32, #tpu.memory_space<vmem>>, vector<1x1x8x128xf32>
      %45 = vector.shape_cast %44 : vector<1x1x8x128xf32> to vector<8x128xf32>
      %46 = vector.shape_cast %43 : vector<8x128xf32> to vector<1x1x8x128xf32>
      tpu.vector_store %arg4[%c0_36, %c2, %c0_37, %c0_38], %46 {strides = array<i32>} : memref<1x3x8x128xf32, #tpu.memory_space<vmem>>, vector<1x1x8x128xf32>,
    } else {
    }
    return
  }
  func.func @transform_0(%arg0: i32, %arg1: i32) -> (i32, i32) {
    %c1_i32 = arith.constant 1 : i32
    %0 = arith.muli %arg0, %c1_i32 : i32
    %1 = arith.addi %0, %arg1 : i32
    %c0_i32 = arith.constant 0 : i32
    %c0_i32_0 = arith.constant 0 : i32
    return %1, %c0_i32 : i32, i32
  }
  func.func @transform_1(%arg0: i32, %arg1: i32) -> (i32, i32) {
    %c1_i32 = arith.constant 1 : i32
    %0 = arith.muli %arg0, %c1_i32 : i32
    %1 = arith.addi %0, %arg1 : i32
    %c0_i32 = arith.constant 0 : i32
    %c0_i32_0 = arith.constant 0 : i32
    return %1, %c0_i32 : i32, i32
  }
  func.func @transform_2(%arg0: i32, %arg1: i32) -> (i32, i32, i32, i32) {
    %c0_i32 = arith.constant 0 : i32
    %c0_i32_0 = arith.constant 0 : i32
    %c0_i32_1 = arith.constant 0 : i32
    %c0_i32_2 = arith.constant 0 : i32
    return %arg0, %c0_i32, %c0_i32_0, %c0_i32_1 : i32, i32, i32, i32
  }
}

</mosaic_0001>

<llo_original>
// kernel: tpu_custom_call.1
$region0: #{tpu_custom_call.1}
  #allocation0 [shape = 'u32[]', space=smem, size = 0x4, offset = 0x4, fixed_abs, tag = 'smem constant byte address 0x4 - core index']
  #allocation1 [shape = 'u32[144,128]{1,0:T(1,128)}', space=vmem, size = 0x12000, scoped, tag = 'internal scratch']
  #allocation2 [shape = 'f32[8,128]{1,0:T(8,128)}', space=vmem, size = 0x1000, scoped, tag = 'scratch operand']
  #allocation3 [shape = 'f32[8,128]{1,0:T(8,128)}', space=vmem, size = 0x1000, scoped, tag = 'scratch operand']
  #allocation4 [shape = 'f32[8,128]{1,0:T(8,128)}', space=vmem, size = 0x1000, scoped, tag = 'scratch operand']
  %s0 = inlined_call_operand.hbm [shape: f32[16,128], index: 0, kind: input, shape index: {}]
  %s1 = inlined_call_operand.hbm [shape: f32[16,128], index: 1, kind: input, shape index: {}]
  %s2 = inlined_call_operand.hbm [shape: f32[1,3,8,128], index: 2, kind: output, shape index: {}]
  %s3 = sld [smem:[#allocation0]]
  $region34: #{tpu_custom_call.1} parent=0
    _
  %s5 = ssub.s32 1, %s3
  %s6 = scalar_select 0, %s5, %s3
  $region1: #{tpu_custom_call.1} parent=0
    #allocation5 [shape = 'u8[8192]{0}', space=vmem, size = 0x2000, scoped, tag = 'input window, operand 0, single buffered']
    #allocation6 [shape = 's32[1]{0}', space=sflag, size = 0x4, scoped, tag = 'scoped memory for tpu_custom_call.1']
    #allocation7 [shape = 's32[1]{0}', space=sflag, size = 0x4, scoped, tag = 'scoped memory for tpu_custom_call.1']
    #allocation8 [shape = 'u8[8192]{0}', space=vmem, size = 0x2000, scoped, tag = 'input window, operand 1, single buffered']
    #allocation9 [shape = 's32[1]{0}', space=sflag, size = 0x4, scoped, tag = 'scoped memory for tpu_custom_call.1']
    #allocation10 [shape = 'u8[12288]{0}', space=vmem, size = 0x3000, scoped, tag = 'output window, operand 0, single buffered']
    %7 = vsyncpa [#allocation6], 0
    %8 = vsyncpa [#allocation9], 0
    %9 = vsyncpa [#allocation7], 0
    // Predicated region
    $region2: #{tpu_custom_call.1} parent=1 // pred_check
      _
    $region3: #{tpu_custom_call.1} parent=1 // pred_check_branch
      %11 = sbr.rel (0) target = $region5
    $region4: #{tpu_custom_call.1} parent=1 // pred_region
      %s12 = sadd.s32 0, 0
      %s13 = smul.u32 2, %s12
      %s15 = ssub.s32 256, 256
      %16 = vsyncadd [#allocation6], %s15
      %s17 = smul.addr %s13, 128
      %s18 = scalar_lea.hbm %s0, %s17
      %s19 = sshll.u32 [#allocation5], 4
      %s20 = int_to_ptr.vmem [resolvable:$true] %s19
      %25 = dma.hbm_to_vmem [thread:$0]  %s18, 256, %s20, [#allocation6], 128, 128, 8
    $region5: #{tpu_custom_call.1} parent=1 // pred_fallthru
      _
    // Predicated region
    $region6: #{tpu_custom_call.1} parent=1 // pred_check
      _
    $region7: #{tpu_custom_call.1} parent=1 // pred_check_branch
      %27 = sbr.rel (0) target = $region9
    $region8: #{tpu_custom_call.1} parent=1 // pred_region
      %s28 = sadd.s32 0, 0
      %s29 = smul.u32 2, %s28
      %s31 = ssub.s32 256, 256
      %32 = vsyncadd [#allocation9], %s31
      %s33 = smul.addr %s29, 128
      %s34 = scalar_lea.hbm %s1, %s33
      %s35 = sshll.u32 [#allocation8], 4
      %s36 = int_to_ptr.vmem [resolvable:$true] %s35
      %41 = dma.hbm_to_vmem [thread:$0]  %s34, 256, %s36, [#allocation9], 128, 128, 8
    $region9: #{tpu_custom_call.1} parent=1 // pred_fallthru
      _
    // Predicated region
    $region10: #{tpu_custom_call.1} parent=1 // pred_check
      _
    $region11: #{tpu_custom_call.1} parent=1 // pred_check_branch
      %43 = sbr.rel (0) target = $region13
    $region12: #{tpu_custom_call.1} parent=1 // pred_region
      %44 = dma.done [#allocation6], 256
    $region13: #{tpu_custom_call.1} parent=1 // pred_fallthru
      _
    // Predicated region
    $region14: #{tpu_custom_call.1} parent=1 // pred_check
      _
    $region15: #{tpu_custom_call.1} parent=1 // pred_check_branch
      %46 = sbr.rel (0) target = $region17
    $region16: #{tpu_custom_call.1} parent=1 // pred_region
      %47 = dma.done [#allocation9], 256
    $region17: #{tpu_custom_call.1} parent=1 // pred_fallthru
      _
    %s48 = sadd.s32 0, 0
    %s49 = smul.u32 2, %s48
    %s50 = sadd.s32 0, 0
    %s51 = smul.u32 2, %s50
    %p52 = scmp.eq.s32.totalorder 0, 0
    // Predicated region
    $region18: #{tpu_custom_call.1} parent=1 // pred_check
      %p53 = pneg %p52
    $region19: #{tpu_custom_call.1} parent=1 // pred_check_branch
      %55 = sbr.rel (%p53) target = $region21
    $region20: #{tpu_custom_call.1} parent=1 // pred_region
      %56 = vst [vmem:[#allocation2] sm:$0xff] 0.0
      %57 = vst [vmem:[#allocation3] sm:$0xff] 0.0
      %58 = vst [vmem:[#allocation4] sm:$0xff] 0.0
    $region21: #{tpu_custom_call.1} parent=1 // pred_fallthru
      _
    %v59 = vld [vmem:[#allocation5] sm:$0xff]
    %v60 = vld [vmem:[#allocation5 + $0x8] sm:$0xff]
    %v61 = vld [vmem:[#allocation8] sm:$0xff]
    %v62 = vld [vmem:[#allocation8 + $0x8] sm:$0xff]
    %v63 = vld [vmem:[#allocation2] sm:$0xff]
    %v64 = vmul.f32 %v59, %v61
    %v65 = vmul.f32 %v60, %v62
    %v66 = vadd.f32 %v64, %v65
    %v67 = vadd.f32 %v63, %v66
    %68 = vst [vmem:[#allocation2] sm:$0xff] %v67
    %v69 = vld [vmem:[#allocation3] sm:$0xff]
    %v70 = vadd.f32 %v59, %v61
    %v71 = vadd.f32 %v60, %v62
    %v72 = vadd.f32 %v70, %v71
    %v73 = vadd.f32 %v69, %v72
    %74 = vst [vmem:[#allocation3] sm:$0xff] %v73
    %v75 = vlog2.pop %v59
    %v76 = vmul.f32 %v75, 0.6931472
    %v77 = vlog2.pop %v60
    %v78 = vmul.f32 %v77, 0.6931472
    %v79 = vmax.f32 %v76, -100.0
    %v80 = vmax.f32 %v78, -100.0
    %v81 = vsub.f32 1.0, %v59
    %v82 = vsub.f32 1.0, %v60
    %v83 = vlog2.pop %v81
    %v84 = vmul.f32 %v83, 0.6931472
    %v85 = vlog2.pop %v82
    %v86 = vmul.f32 %v85, 0.6931472
    %v87 = vmax.f32 %v84, -100.0
    %v88 = vmax.f32 %v86, -100.0
    %v89 = vsub.f32 %v79, %v87
    %v90 = vsub.f32 %v80, %v88
    %v91 = vmul.f32 %v61, %v89
    %v92 = vmul.f32 %v62, %v90
    %v93 = vadd.f32 %v87, %v91
    %v94 = vadd.f32 %v88, %v92
    %v95 = vld [vmem:[#allocation4] sm:$0xff]
    %v96 = vadd.f32 %v93, %v94
    %v97 = vadd.f32 %v95, %v96
    %98 = vst [vmem:[#allocation4] sm:$0xff] %v97
    // Predicated region
    $region22: #{tpu_custom_call.1} parent=1 // pred_check
      %p99 = pneg %p52
    $region23: #{tpu_custom_call.1} parent=1 // pred_check_branch
      %101 = sbr.rel (%p99) target = $region25
    $region24: #{tpu_custom_call.1} parent=1 // pred_region
      %v102 = vld [vmem:[#allocation2] sm:$0xff]
      %103 = vst [vmem:[#allocation10] sm:$0xff] %v102
      %v104 = vld [vmem:[#allocation3] sm:$0xff]
      %s105 = scalar_lea.vmem [#allocation10], 8
      %106 = vst [vmem:[%s105] sm:$0xff] %v104
      %v107 = vld [vmem:[#allocation4] sm:$0xff]
      %s108 = scalar_lea.vmem [#allocation10], 16
      %109 = vst [vmem:[%s108] sm:$0xff] %v107
    $region25: #{tpu_custom_call.1} parent=1 // pred_fallthru
      _
    // Predicated region
    $region26: #{tpu_custom_call.1} parent=1 // pred_check
      _
    $region27: #{tpu_custom_call.1} parent=1 // pred_check_branch
      %111 = sbr.rel (0) target = $region29
    $region28: #{tpu_custom_call.1} parent=1 // pred_region
      %s113 = ssub.s32 384, 384
      %114 = vsyncadd [#allocation7], %s113
      %s115 = sshll.u32 [#allocation10], 4
      %s116 = int_to_ptr.vmem [resolvable:$true] %s115
      %121 = dma.vmem_to_hbm [thread:$0]  %s116, 384, %s2, [#allocation7], 128, 128, 8
    $region29: #{tpu_custom_call.1} parent=1 // pred_fallthru
      _
    // Predicated region
    $region30: #{tpu_custom_call.1} parent=1 // pred_check
      _
    $region31: #{tpu_custom_call.1} parent=1 // pred_check_branch
      %123 = sbr.rel (0) target = $region33
    $region32: #{tpu_custom_call.1} parent=1 // pred_region
      %124 = dma.done [#allocation7], 384
    $region33: #{tpu_custom_call.1} parent=1 // pred_fallthru
      _
    %125 = vsyncpa [#allocation6], 1
    %126 = vsyncpa [#allocation9], 1
    %127 = vsyncpa [#allocation7], 1

</llo_original>
